<compile_context>
chip_gen: v6e
topology: v6e:2x2x1
jax: 0.10.0
libtpu: 0.0.40
codegen_flags: <defaults>
</compile_context>

<pallas_src>
import functools

import jax
import jax.numpy as jnp
from jax.experimental import pallas as pl
from jax.experimental.pallas import tpu as pltpu

EPS = 1e-9
_LANE = 128
_TILE_ROWS = 4096            # 4096*128*4B = 2 MiB per f32 input tile (masked-AE path)
_SUMSQ_TILE_ROWS = 4096      # 2 MiB per f32 tile (single-input sumsq path)
_SMALL_BLOCK_BYTES = 1 << 20 # single-block fallback limit per array


# ----------------------------------------------------------------------------
# Pallas kernels
# ----------------------------------------------------------------------------
def _masked_ae_tiled_kernel(gt_ref, pred_ref, pw_ref, sae_ref, sm_ref, *,
                            weight, rows_total, tile_rows):
    """Streaming masked-AE over (1, tile_rows, 128) tiles of one sample.

    grid = (N, num_row_tiles); axis 0 'parallel' (per-sample), axis 1 'arbitrary'
    (reduction).  sae/sm are per-sample accumulators (same output block across the
    reduction axis).  The mask is derived in-kernel from gt (gt > 0).
    """
    r = pl.program_id(1)

    @pl.when(r == 0)
    def _():
        sae_ref[...] = jnp.zeros_like(sae_ref)
        sm_ref[...] = jnp.zeros_like(sm_ref)

    g = gt_ref[...].astype(jnp.float32)
    p = pred_ref[...].astype(jnp.float32)
    m = (g > 0.0).astype(jnp.float32)          # in-kernel mask: no extra HBM stream
    ae = jnp.abs(p - g) * m

    # Boundary tile (only possible when rows_total % tile_rows != 0): zero the
    # out-of-bounds rows so they do not contribute to the sums.
    if rows_total % tile_rows != 0:
        rid = jax.lax.broadcasted_iota(jnp.int32, ae.shape, 1)
        valid = rid < (rows_total - r * tile_rows)
        ae = jnp.where(valid, ae, 0.0)
        m = jnp.where(valid, m, 0.0)

    pw_ref[...] = (ae * jnp.float32(weight)).astype(pw_ref.dtype)
    sae_ref[...] = sae_ref[...] + jnp.sum(ae, keepdims=True)
    sm_ref[...] = sm_ref[...] + jnp.sum(m, keepdims=True)


def _masked_ae_full_kernel(gt_ref, pred_ref, pw_ref, sae_ref, sm_ref, *, weight):
    """Single full-array block (used for tiny coarse levels; no padding needed)."""
    g = gt_ref[...].astype(jnp.float32)
    p = pred_ref[...].astype(jnp.float32)
    m = (g > 0.0).astype(jnp.float32)
    ae = jnp.abs(p - g) * m
    pw_ref[...] = (ae * jnp.float32(weight)).astype(pw_ref.dtype)
    sae_ref[...] = jnp.sum(ae, axis=-1, keepdims=True)
    sm_ref[...] = jnp.sum(m, axis=-1, keepdims=True)


def _sumsq_full_kernel(x_ref, o_ref):
    x = x_ref[...].astype(jnp.float32)
    o_ref[...] = jnp.sum(x * x, keepdims=True)


def _sumsq_tiled_kernel(x_ref, o_ref, *, rows_total, tile_rows):
    r = pl.program_id(0)

    @pl.when(r == 0)
    def _():
        o_ref[...] = jnp.zeros_like(o_ref)

    x = x_ref[...].astype(jnp.float32)
    if rows_total % tile_rows != 0:
        rid = jax.lax.broadcasted_iota(jnp.int32, x.shape, 0)
        x = jnp.where(rid < (rows_total - r * tile_rows), x, 0.0)
    o_ref[...] = o_ref[...] + jnp.sum(x * x, keepdims=True)


# ----------------------------------------------------------------------------
# Wrappers around pallas_call
# ----------------------------------------------------------------------------
def _masked_ae_tiled(gt2, pred2, weight, out_dtype):
    """gt2/pred2: (N, L) with L % 128 == 0. Returns sae(N,), sm(N,), pw(N,L)."""
    n, l = gt2.shape
    r_tot = l // _LANE
    g3 = gt2.reshape(n, r_tot, _LANE)      # metadata-only views
    p3 = pred2.reshape(n, r_tot, _LANE)

    tr = r_tot if r_tot <= _TILE_ROWS else _TILE_ROWS   # full dim or multiple of 8
    kr = pl.cdiv(r_tot, tr)

    kernel = functools.partial(_masked_ae_tiled_kernel, weight=float(weight),
                               rows_total=r_tot, tile_rows=tr)
    pw, sae, sm = pl.pallas_call(
        kernel,
        out_shape=(
            jax.ShapeDtypeStruct((n, r_tot, _LANE), out_dtype),
            jax.ShapeDtypeStruct((n, 1, 1), jnp.float32),
            jax.ShapeDtypeStruct((n, 1, 1), jnp.float32),
        ),
        grid=(n, kr),
        in_specs=[pl.BlockSpec((1, tr, _LANE), lambda i, r: (i, r, 0))] * 2,
        out_specs=(
            pl.BlockSpec((1, tr, _LANE), lambda i, r: (i, r, 0)),
            pl.BlockSpec((1, 1, 1), lambda i, r: (i, 0, 0)),
            pl.BlockSpec((1, 1, 1), lambda i, r: (i, 0, 0)),
        ),
        compiler_params=pltpu.CompilerParams(
            dimension_semantics=("parallel", "arbitrary"),
            vmem_limit_bytes=32 * 1024 * 1024),
    )(g3, p3)
    return sae.reshape(n), sm.reshape(n), pw.reshape(n, l)


def _masked_ae_full(gt2, pred2, weight, out_dtype):
    """Single-block path for small levels (no padding, full-dim blocks)."""
    n, l = gt2.shape
    kernel = functools.partial(_masked_ae_full_kernel, weight=float(weight))
    pw, sae, sm = pl.pallas_call(
        kernel,
        out_shape=(
            jax.ShapeDtypeStruct((n, l), out_dtype),
            jax.ShapeDtypeStruct((n, 1), jnp.float32),
            jax.ShapeDtypeStruct((n, 1), jnp.float32),
        ),
        grid=(1,),
        in_specs=[pl.BlockSpec((n, l), lambda i: (0, 0))] * 2,
        out_specs=(
            pl.BlockSpec((n, l), lambda i: (0, 0)),
            pl.BlockSpec((n, 1), lambda i: (0, 0)),
            pl.BlockSpec((n, 1), lambda i: (0, 0)),
        ),
        compiler_params=pltpu.CompilerParams(dimension_semantics=("arbitrary",)),
    )(gt2, pred2)
    return sae.reshape(n), sm.reshape(n), pw


def _masked_ae_level(gt_rs, pred, weight):
    """gt_rs/pred: (N, C, H, W). Returns (scalar mae loss, pointwise AE in NCHW)."""
    n, c, h, w = pred.shape
    l = c * h * w
    out_dtype = pred.dtype

    gt2 = gt_rs.reshape(n, l)
    pred2 = pred.reshape(n, l)

    if l >= _LANE and l % _LANE == 0:
        sae, sm, pw = _masked_ae_tiled(gt2, pred2, weight, out_dtype)
    elif n * l * gt2.dtype.itemsize <= _SMALL_BLOCK_BYTES:
        sae, sm, pw = _masked_ae_full(gt2, pred2, weight, out_dtype)
    else:
        # Rare fallback: large level whose L is not a multiple of 128.
        # One zero-pad copy (padded gt==0 -> mask==0, so pads cancel), then tiled path.
        lp = ((l + _LANE - 1) // _LANE) * _LANE
        gp = jnp.pad(gt2, ((0, 0), (0, lp - l)))
        pp = jnp.pad(pred2, ((0, 0), (0, lp - l)))
        sae, sm, pw_p = _masked_ae_tiled(gp, pp, weight, out_dtype)
        pw = pw_p[:, :l]

    per_sample = sae / (sm + EPS)
    loss = jnp.float32(weight) * jnp.mean(per_sample)
    return loss, pw.reshape(n, c, h, w)


def _sumsq(param):
    """sum(p*p) of one parameter via Pallas (tiled accumulator for large params)."""
    flat = param.reshape(-1)
    m = flat.shape[0]

    if m >= _LANE and m % _LANE == 0:
        r_tot = m // _LANE
        x2 = flat.reshape(r_tot, _LANE)
    elif m * flat.dtype.itemsize <= _SMALL_BLOCK_BYTES:
        r_tot = 1
        x2 = flat.reshape(1, m)
    else:
        # Rare: huge, non-128-divisible parameter -> single zero-pad copy.
        mp = ((m + _LANE - 1) // _LANE) * _LANE
        r_tot = mp // _LANE
        x2 = jnp.pad(flat, (0, mp - m)).reshape(r_tot, _LANE)

    if r_tot <= _SUMSQ_TILE_ROWS:
        out = pl.pallas_call(
            _sumsq_full_kernel,
            out_shape=jax.ShapeDtypeStruct((1, 1), jnp.float32),
            grid=(1,),
            in_specs=[pl.BlockSpec(x2.shape, lambda i: (0, 0))],
            out_specs=pl.BlockSpec((1, 1), lambda i: (0, 0)),
            compiler_params=pltpu.CompilerParams(dimension_semantics=("arbitrary",)),
        )(x2)
    else:
        tr = _SUMSQ_TILE_ROWS
        kr = pl.cdiv(r_tot, tr)
        kernel = functools.partial(_sumsq_tiled_kernel, rows_total=r_tot, tile_rows=tr)
        out = pl.pallas_call(
            kernel,
            out_shape=jax.ShapeDtypeStruct((1, 1), jnp.float32),
            grid=(kr,),
            in_specs=[pl.BlockSpec((tr, _LANE), lambda r: (r, 0))],
            out_specs=pl.BlockSpec((1, 1), lambda r: (0, 0)),
            compiler_params=pltpu.CompilerParams(
                dimension_semantics=("arbitrary",),
                vmem_limit_bytes=32 * 1024 * 1024),
        )(x2)
    return out[0, 0]


def _reg_loss(reg_params, weight_decay):
    """weight_decay * sum_p sum(p*p)/2 (no concatenation of parameters)."""
    total = jnp.float32(0.0)
    for _, p in reg_params:
        total = total + _sumsq(p)
    return total * jnp.float32(0.5 * weight_decay)


# TODO(synk): GT nearest-resampling stays as XLA glue (strided slice / gather);
# a Pallas gather kernel buys nothing for integer downsample factors.
def _nearest_resize_nchw(x, out_h, out_w):
    """F.interpolate(x, size=(out_h, out_w), mode='nearest') for NCHW."""
    _, _, in_h, in_w = x.shape
    if in_h == out_h and in_w == out_w:
        return x
    if in_h % out_h == 0 and in_w % out_w == 0:
        # Integer downsample: floor(i*in/out) == i*stride -> cheap strided slice.
        sh, sw = in_h // out_h, in_w // out_w
        return x[:, :, ::sh, ::sw]
    ri = jnp.clip(jnp.floor(jnp.arange(out_h) * (in_h / out_h)).astype(jnp.int32), 0, in_h - 1)
    ci = jnp.clip(jnp.floor(jnp.arange(out_w) * (in_w / out_w)).astype(jnp.int32), 0, in_w - 1)
    return x[:, :, ri][:, :, :, ci]


# ----------------------------------------------------------------------------
# MultiScaleMAE forward
# ----------------------------------------------------------------------------
def multi_scale_mae_forward(sample_inputs, sample_gt, pred, aux, iteration,
                            reg_params, weight_decay=1e-4, modality='invdepth'):
    del sample_inputs, pred, iteration  # unused in the loss math (same as PyTorch)
    loss_weights = [100 * 1050 * w for w in (1 / 8, 1 / 4, 1 / 2, 1)]

    gt = sample_gt[modality]                       # (N, 1, H, W), NCHW
    preds_all = aux[f'{modality}s_all']

    sub_losses = {}
    pointwise_losses = {}
    total_mnll = jnp.float32(0.0)

    # TODO(synk): the tiny coarse levels could be fused into one pallas_call to
    # amortize launch cost; kept as one call per level for clarity.
    for level, lvl_pred in enumerate(preds_all):
        out_h, out_w = lvl_pred.shape[-2], lvl_pred.shape[-1]
        gt_rs = _nearest_resize_nchw(gt, out_h, out_w)
        loss, pw = _masked_ae_level(gt_rs, lvl_pred, loss_weights[level])
        sub_losses['02_mnll/level_%d' % level] = loss
        pointwise_losses['00_nll/level_%d' % level] = pw
        total_mnll = total_mnll + loss

    total_reg = _reg_loss(reg_params, weight_decay)
    total_loss = total_mnll + total_reg

    sub_losses['00_total_mnll'] = total_mnll
    sub_losses['01_reg'] = total_reg
    return total_loss, sub_losses, pointwise_losses


# ----------------------------------------------------------------------------
# Main
# ----------------------------------------------------------------------------
if __name__ == "__main__":
    key = jax.random.PRNGKey(0)
    k_gt, k_p0, k_p1, k_p2, k_p3, k_w0, k_w1, k_w2 = jax.random.split(key, 8)

    N, C, H, W = 2, 1, 16, 16

    # Ground truth inverse depth with some invalid (<=0) pixels to exercise the mask.
    gt = jax.random.uniform(k_gt, (N, C, H, W), jnp.float32, minval=-0.2, maxval=1.0)

    # Multi-scale predictions (coarse -> fine), one per loss weight.
    preds_all = [
        jax.random.uniform(k_p0, (N, C, H // 8, W // 8), jnp.float32),
        jax.random.uniform(k_p1, (N, C, H // 4, W // 4), jnp.float32),
        jax.random.uniform(k_p2, (N, C, H // 2, W // 2), jnp.float32),
        jax.random.uniform(k_p3, (N, C, H, W), jnp.float32),
    ]

    # Deterministic synthetic "model" parameters; apply the same filtering rule as
    # get_regularization_parameters ('pred' not in name, not *.bias, not *bn.weight).
    named_params = {
        'encoder.conv1.weight': 0.05 * jax.random.normal(k_w0, (8, 4, 3, 3), jnp.float32),
        'encoder.conv1.bias': jnp.zeros((8,), jnp.float32),
        'encoder.bn.weight': jnp.ones((8,), jnp.float32),
        'decoder.conv.weight': 0.05 * jax.random.normal(k_w1, (4, 8, 3, 3), jnp.float32),
        'pred.conv.weight': 0.05 * jax.random.normal(k_w2, (1, 4, 3, 3), jnp.float32),
    }
    reg_params = [
        (name, p) for name, p in named_params.items()
        if ('pred' not in name) and (not name.endswith('bias')) and (not name.endswith('bn.weight'))
    ]

    sample_gt = {'invdepth': gt}
    aux = {'invdepths_all': preds_all}

    total_loss, sub_losses, pointwise_losses = multi_scale_mae_forward(
        sample_inputs=None, sample_gt=sample_gt, pred=None, aux=aux, iteration=0,
        reg_params=reg_params, weight_decay=1e-4, modality='invdepth')

    jax.block_until_ready(total_loss)
    jax.block_until_ready(sub_losses)
    jax.block_until_ready(pointwise_losses)

    print("KERNEL_OK")
</pallas_src>

<mosaic_0001>
module attributes {stable_mosaic.version = 11 : i64} {
  func.func @_masked_ae_full_kernel(%arg0: i32, %arg1: memref<2x4xf32, #tpu.memory_space<vmem>>, %arg2: memref<2x4xf32, #tpu.memory_space<vmem>>, %arg3: memref<2x4xf32, #tpu.memory_space<vmem>>, %arg4: memref<2x1xf32, #tpu.memory_space<vmem>>, %arg5: memref<2x1xf32, #tpu.memory_space<vmem>>) attributes {dimension_semantics = [#tpu.dimension_semantics<arbitrary>], iteration_bounds = array<i64: 1>, scalar_prefetch = 0 : i64, scratch_operands = 0 : i64, tpu.core_type = #tpu.core_type<tc>, window_params = [{pipeline_mode = #tpu.pipeline_mode<synchronous>, transform_indices = @transform_0, window_bounds = array<i64: 2, 4>}, {pipeline_mode = #tpu.pipeline_mode<synchronous>, transform_indices = @transform_1, window_bounds = array<i64: 2, 4>}, {pipeline_mode = #tpu.pipeline_mode<synchronous>, transform_indices = @transform_2, window_bounds = array<i64: 2, 4>}, {pipeline_mode = #tpu.pipeline_mode<synchronous>, transform_indices = @transform_3, window_bounds = array<i64: 2, 1>}, {pipeline_mode = #tpu.pipeline_mode<synchronous>, transform_indices = @transform_4, window_bounds = array<i64: 2, 1>}]} {
    %c0 = arith.constant 0 : index
    %c0_0 = arith.constant 0 : index
    %0 = vector.load %arg1[%c0, %c0_0] : memref<2x4xf32, #tpu.memory_space<vmem>>, vector<2x4xf32>
    %c0_1 = arith.constant 0 : index
    %c0_2 = arith.constant 0 : index
    %1 = vector.load %arg2[%c0_1, %c0_2] : memref<2x4xf32, #tpu.memory_space<vmem>>, vector<2x4xf32>
    %cst = arith.constant 0.000000e+00 : f32
    %2 = vector.broadcast %cst : f32 to vector<2x4xf32>
    %3 = arith.cmpf ogt, %0, %2 : vector<2x4xf32>
    %4 = arith.extui %3 : vector<2x4xi1> to vector<2x4xi32>
    %5 = arith.sitofp %4 : vector<2x4xi32> to vector<2x4xf32>
    %6 = arith.subf %1, %0 : vector<2x4xf32>
    %7 = math.absf %6 : vector<2x4xf32>
    %8 = arith.mulf %7, %5 : vector<2x4xf32>
    %cst_3 = arith.constant 1.312500e+04 : f32
    %9 = vector.broadcast %cst_3 : f32 to vector<2x4xf32>
    %10 = arith.mulf %8, %9 : vector<2x4xf32>
    %c0_4 = arith.constant 0 : index
    %c0_5 = arith.constant 0 : index
    %11 = vector.load %arg3[%c0_4, %c0_5] : memref<2x4xf32, #tpu.memory_space<vmem>>, vector<2x4xf32>
    tpu.vector_store %arg3[%c0_4, %c0_5], %10 {strides = array<i32>} : memref<2x4xf32, #tpu.memory_space<vmem>>, vector<2x4xf32>,
    %cst_6 = arith.constant dense<0.000000e+00> : vector<2xf32>
    %12 = vector.multi_reduction <add>, %8, %cst_6 [1] : vector<2x4xf32> to vector<2xf32>
    %13 = vector.shape_cast %12 : vector<2xf32> to vector<2x1xf32>
    %c0_7 = arith.constant 0 : index
    %c0_8 = arith.constant 0 : index
    %14 = vector.load %arg4[%c0_7, %c0_8] : memref<2x1xf32, #tpu.memory_space<vmem>>, vector<2x1xf32>
    tpu.vector_store %arg4[%c0_7, %c0_8], %13 {strides = array<i32>} : memref<2x1xf32, #tpu.memory_space<vmem>>, vector<2x1xf32>,
    %cst_9 = arith.constant dense<0.000000e+00> : vector<2xf32>
    %15 = vector.multi_reduction <add>, %5, %cst_9 [1] : vector<2x4xf32> to vector<2xf32>
    %16 = vector.shape_cast %15 : vector<2xf32> to vector<2x1xf32>
    %c0_10 = arith.constant 0 : index
    %c0_11 = arith.constant 0 : index
    %17 = vector.load %arg5[%c0_10, %c0_11] : memref<2x1xf32, #tpu.memory_space<vmem>>, vector<2x1xf32>
    tpu.vector_store %arg5[%c0_10, %c0_11], %16 {strides = array<i32>} : memref<2x1xf32, #tpu.memory_space<vmem>>, vector<2x1xf32>,
    return
  }
  func.func @transform_0(%arg0: i32) -> (i32, i32) {
    %c0_i32 = arith.constant 0 : i32
    %c0_i32_0 = arith.constant 0 : i32
    %c0_i32_1 = arith.constant 0 : i32
    return %c0_i32, %c0_i32_0 : i32, i32
  }
  func.func @transform_1(%arg0: i32) -> (i32, i32) {
    %c0_i32 = arith.constant 0 : i32
    %c0_i32_0 = arith.constant 0 : i32
    %c0_i32_1 = arith.constant 0 : i32
    return %c0_i32, %c0_i32_0 : i32, i32
  }
  func.func @transform_2(%arg0: i32) -> (i32, i32) {
    %c0_i32 = arith.constant 0 : i32
    %c0_i32_0 = arith.constant 0 : i32
    %c0_i32_1 = arith.constant 0 : i32
    return %c0_i32, %c0_i32_0 : i32, i32
  }
  func.func @transform_3(%arg0: i32) -> (i32, i32) {
    %c0_i32 = arith.constant 0 : i32
    %c0_i32_0 = arith.constant 0 : i32
    %c0_i32_1 = arith.constant 0 : i32
    return %c0_i32, %c0_i32_0 : i32, i32
  }
  func.func @transform_4(%arg0: i32) -> (i32, i32) {
    %c0_i32 = arith.constant 0 : i32
    %c0_i32_0 = arith.constant 0 : i32
    %c0_i32_1 = arith.constant 0 : i32
    return %c0_i32, %c0_i32_0 : i32, i32
  }
}

</mosaic_0001>

<llo_original>
// kernel: tpu_custom_call.1
$region0: #{tpu_custom_call.1}
  #allocation0 [shape = 'u32[]', space=smem, size = 0x4, offset = 0x4, fixed_abs, tag = 'smem constant byte address 0x4 - core index']
  #allocation1 [shape = 'u32[144,128]{1,0:T(1,128)}', space=vmem, size = 0x12000, scoped, tag = 'internal scratch']
  %s0 = inlined_call_operand.hbm [shape: f32[2,4], index: 0, kind: input, shape index: {}]
  %s1 = inlined_call_operand.hbm [shape: f32[2,4], index: 1, kind: input, shape index: {}]
  %s2 = inlined_call_operand.hbm [shape: f32[2,4], index: 2, kind: output, shape index: {0}]
  %s3 = inlined_call_operand.vmem [shape: f32[2,1], index: 3, kind: output, shape index: {1}]
  %s4 = inlined_call_operand.vmem [shape: f32[2,1], index: 4, kind: output, shape index: {2}]
  %5 = xla_tuple %s2, %s3, %s4
  %s6 = sld [smem:[#allocation0]]
  $region42: #{tpu_custom_call.1} parent=0
    _
  %s8 = ssub.s32 1, %s6
  %s9 = scalar_select 0, %s8, %s6
  $region1: #{tpu_custom_call.1} parent=0
    #allocation2 [shape = 'u8[1024]{0}', space=vmem, size = 0x400, scoped, tag = 'input window, operand 0, single buffered']
    #allocation3 [shape = 's32[1]{0}', space=sflag, size = 0x4, scoped, tag = 'scoped memory for tpu_custom_call.1']
    #allocation4 [shape = 's32[1]{0}', space=sflag, size = 0x4, scoped, tag = 'scoped memory for tpu_custom_call.1']
    #allocation5 [shape = 'u8[1024]{0}', space=vmem, size = 0x400, scoped, tag = 'input window, operand 1, single buffered']
    #allocation6 [shape = 's32[1]{0}', space=sflag, size = 0x4, scoped, tag = 'scoped memory for tpu_custom_call.1']
    #allocation7 [shape = 'u8[1024]{0}', space=vmem, size = 0x400, scoped, tag = 'output window, operand 0, single buffered']
    %10 = vsyncpa [#allocation3], 0
    %11 = vsyncpa [#allocation6], 0
    %12 = vsyncpa [#allocation4], 0
    // Predicated region
    $region2: #{tpu_custom_call.1} parent=1 // pred_check
      _
    $region3: #{tpu_custom_call.1} parent=1 // pred_check_branch
      %14 = sbr.rel (0) target = $region5
    $region4: #{tpu_custom_call.1} parent=1 // pred_region
      %s16 = ssub.s32 32, 32
      %17 = vsyncadd [#allocation3], %s16
      %s19 = sshll.u32 [#allocation2], 4
      %s20 = int_to_ptr.vmem [resolvable:$true] %s19
      %22 = dma.hbm_to_vmem [thread:$0]  %s0, 32, %s20, [#allocation3]
    $region5: #{tpu_custom_call.1} parent=1 // pred_fallthru
      _
    // Predicated region
    $region6: #{tpu_custom_call.1} parent=1 // pred_check
      _
    $region7: #{tpu_custom_call.1} parent=1 // pred_check_branch
      %24 = sbr.rel (0) target = $region9
    $region8: #{tpu_custom_call.1} parent=1 // pred_region
      %s26 = ssub.s32 32, 32
      %27 = vsyncadd [#allocation6], %s26
      %s29 = sshll.u32 [#allocation5], 4
      %s30 = int_to_ptr.vmem [resolvable:$true] %s29
      %32 = dma.hbm_to_vmem [thread:$0]  %s1, 32, %s30, [#allocation6]
    $region9: #{tpu_custom_call.1} parent=1 // pred_fallthru
      _
    // Predicated region
    $region10: #{tpu_custom_call.1} parent=1 // pred_check
      _
    $region11: #{tpu_custom_call.1} parent=1 // pred_check_branch
      %34 = sbr.rel (0) target = $region13
    $region12: #{tpu_custom_call.1} parent=1 // pred_region
      %35 = dma.done [#allocation3], 32
    $region13: #{tpu_custom_call.1} parent=1 // pred_fallthru
      _
    // Predicated region
    $region14: #{tpu_custom_call.1} parent=1 // pred_check
      _
    $region15: #{tpu_custom_call.1} parent=1 // pred_check_branch
      %37 = sbr.rel (0) target = $region17
    $region16: #{tpu_custom_call.1} parent=1 // pred_region
      %38 = dma.done [#allocation6], 32
    $region17: #{tpu_custom_call.1} parent=1 // pred_fallthru
      _
    %v39 = vld [vmem:[#allocation2] sm:$0x3]
    %v40 = vld [vmem:[#allocation5] sm:$0x3]
    %vm41 = vcmp.gt.f32.partialorder %v39, 0.0
    %v42 = vsel %vm41, 1, 0
    %v43 = vcvt.s32.f32 %v42
    %v44 = vsub.f32 %v40, %v39
    %v45 = vand.u32 2147483647, %v44
    %v46 = vmul.f32 %v45, %v43
    %v47 = vmul.f32 %v46, 13125.0
    %vm48 = vcmask 25600
    %49 = vst.msk [vmem:[#allocation7] sm:$0x3] %vm48, %v47
    %v50 = vsel %vm48, %v46, 0.0
    %51 = vadd.xlane.f32.xlu0 %v50
    %v52 = vpop.xlane.xlu0 %51
    %vm53 = vcmask 1024
    %54 = vst.msk [vmem:[%s3] sm:$0x3] %vm53, %v52
    %v55 = vsel %vm48, %v43, 0.0
    %56 = vadd.xlane.f32.xlu0 %v55
    %v57 = vpop.xlane.xlu0 %56
    %58 = vst.msk [vmem:[%s4] sm:$0x3] %vm53, %v57
    // Predicated region
    $region18: #{tpu_custom_call.1} parent=1 // pred_check
      _
    $region19: #{tpu_custom_call.1} parent=1 // pred_check_branch
      %60 = sbr.rel (0) target = $region21
    $region20: #{tpu_custom_call.1} parent=1 // pred_region
      %s62 = ssub.s32 32, 32
      %63 = vsyncadd [#allocation4], %s62
      %s65 = sshll.u32 [#allocation7], 4
      %s66 = int_to_ptr.vmem [resolvable:$true] %s65
      %68 = dma.vmem_to_hbm [thread:$0]  %s66, 32, %s2, [#allocation4]
    $region21: #{tpu_custom_call.1} parent=1 // pred_fallthru
      _
    // Predicated region
    $region22: #{tpu_custom_call.1} parent=1 // pred_check
      _
    $region23: #{tpu_custom_call.1} parent=1 // pred_check_branch
      %70 = sbr.rel (0) target = $region25
    $region24: #{tpu_custom_call.1} parent=1 // pred_region
      _
    $region25: #{tpu_custom_call.1} parent=1 // pred_fallthru
      _
    // Predicated region
    $region26: #{tpu_custom_call.1} parent=1 // pred_check
      _
    $region27: #{tpu_custom_call.1} parent=1 // pred_check_branch
      %72 = sbr.rel (0) target = $region29
    $region28: #{tpu_custom_call.1} parent=1 // pred_region
      _
    $region29: #{tpu_custom_call.1} parent=1 // pred_fallthru
      _
    // Predicated region
    $region30: #{tpu_custom_call.1} parent=1 // pred_check
      _
    $region31: #{tpu_custom_call.1} parent=1 // pred_check_branch
      %74 = sbr.rel (0) target = $region33
    $region32: #{tpu_custom_call.1} parent=1 // pred_region
      %75 = dma.done [#allocation4], 32
    $region33: #{tpu_custom_call.1} parent=1 // pred_fallthru
      _
    // Predicated region
    $region34: #{tpu_custom_call.1} parent=1 // pred_check
      _
    $region35: #{tpu_custom_call.1} parent=1 // pred_check_branch
      %77 = sbr.rel (0) target = $region37
    $region36: #{tpu_custom_call.1} parent=1 // pred_region
      _
    $region37: #{tpu_custom_call.1} parent=1 // pred_fallthru
      _
    // Predicated region
    $region38: #{tpu_custom_call.1} parent=1 // pred_check
      _
    $region39: #{tpu_custom_call.1} parent=1 // pred_check_branch
      %79 = sbr.rel (0) target = $region41
    $region40: #{tpu_custom_call.1} parent=1 // pred_region
      _
    $region41: #{tpu_custom_call.1} parent=1 // pred_fallthru
      _
    %80 = vsyncpa [#allocation3], 1
    %81 = vsyncpa [#allocation6], 1
    %82 = vsyncpa [#allocation4], 1

</llo_original>
